<compile_context>
chip_gen: v7x
topology: tpu7x:2x2x1
jax: 0.10.0
libtpu: 0.0.40
codegen_flags: <defaults>
</compile_context>

<pallas_src>
import jax
import jax.numpy as jnp
from jax import lax
from jax.experimental import pallas as pl
from jax.experimental.pallas import tpu as pltpu


def _round_up(v, m):
    return (v + m - 1) // m * m


def _fc_kernel(x_ref, w_ref, b_ref, o_ref, acc_ref):
    """One K-tile of the GEMV-like FC: acc += x_tile @ w_tile^T (native layout)."""
    k = pl.program_id(0)

    @pl.when(k == 0)
    def _():
        acc_ref[...] = jnp.zeros_like(acc_ref)

    # x_ref: (bs_p, Kt) bf16 ; w_ref: (N_pad, Kt) bf16 (nn.Linear native layout).
    # Contract the shared K axis (trans_b semantics) with f32 accumulation.
    acc_ref[...] += lax.dot_general(
        x_ref[...],
        w_ref[...],
        dimension_numbers=(((1,), (1,)), ((), ())),
        preferred_element_type=jnp.float32,
    )

    @pl.when(k == pl.num_programs(0) - 1)
    def _():
        o_ref[...] = (acc_ref[...] + b_ref[...]).astype(o_ref.dtype)


def gaze_prediction_forward(x, weight, bias, *, k_tile=2048):
    """Pallas equivalent of GazePrediction.forward.

    x:      (bs, seq_len, hidden)        float32
    weight: (num_classes, in_features)   float32  (PyTorch nn.Linear layout)
    bias:   (num_classes,)               float32
    returns (bs, num_classes)            float32
    """
    bs = x.shape[0]
    num_classes, in_features = weight.shape
    x_flat = x.reshape(bs, -1)                      # matches x.view(bs, -1)
    assert x_flat.shape[1] == in_features

    # Padded, lane/sublane-friendly shapes.
    bs_p = _round_up(bs, 8)                         # sublane multiple
    n_pad = _round_up(num_classes, 128)             # lane-dense output slab
    kt = min(k_tile, _round_up(in_features, 256))   # K tile: multiple of 256
    k_p = _round_up(in_features, kt)
    n_k_steps = k_p // kt

    # bf16 operands (f32 accumulate in-kernel); zero-pad K/N/bs — zeros are inert.
    x_p = jnp.zeros((bs_p, k_p), jnp.bfloat16)
    x_p = x_p.at[:bs, :in_features].set(x_flat.astype(jnp.bfloat16))
    w_p = jnp.zeros((n_pad, k_p), jnp.bfloat16)
    w_p = w_p.at[:num_classes, :in_features].set(weight.astype(jnp.bfloat16))
    b_p = jnp.zeros((1, n_pad), jnp.float32)
    b_p = b_p.at[0, :num_classes].set(bias.astype(jnp.float32))

    cost = pl.CostEstimate(
        flops=2 * bs_p * k_p * n_pad,
        transcendentals=0,
        bytes_accessed=(bs_p * k_p + n_pad * k_p) * 2 + bs_p * n_pad * 4,
    )

    out_padded = pl.pallas_call(
        _fc_kernel,
        out_shape=jax.ShapeDtypeStruct((bs_p, n_pad), jnp.float32),
        grid_spec=pltpu.PrefetchScalarGridSpec(
            num_scalar_prefetch=0,
            grid=(n_k_steps,),
            in_specs=[
                pl.BlockSpec((bs_p, kt), lambda k: (0, k)),      # activations
                pl.BlockSpec((n_pad, kt), lambda k: (0, k)),     # weight (native layout)
                pl.BlockSpec((1, n_pad), lambda k: (0, 0)),      # bias
            ],
            out_specs=pl.BlockSpec((bs_p, n_pad), lambda k: (0, 0)),
            scratch_shapes=[pltpu.VMEM((bs_p, n_pad), jnp.float32)],
        ),
        compiler_params=pltpu.CompilerParams(
            dimension_semantics=("arbitrary",),      # K is a reduction axis
        ),
        cost_estimate=cost,
    )(x_p, w_p, b_p)

    return out_padded[:bs, :num_classes]


def init_gaze_prediction_params(key, hidden_size, sequence_length, num_classes):
    """Deterministic init mimicking nn.Linear default (uniform +-1/sqrt(fan_in))."""
    in_features = hidden_size * sequence_length
    k_w, k_b = jax.random.split(key)
    bound = 1.0 / jnp.sqrt(jnp.float32(in_features))
    weight = jax.random.uniform(
        k_w, (num_classes, in_features), jnp.float32, -bound, bound)
    bias = jax.random.uniform(
        k_b, (num_classes,), jnp.float32, -bound, bound)
    return weight, bias


if __name__ == "__main__":
    # Small shapes consistent with the module's forward.
    bs, seq_len, hidden, num_classes = 2, 8, 32, 4

    key = jax.random.PRNGKey(0)
    k_x, k_p = jax.random.split(key)

    x = jax.random.normal(k_x, (bs, seq_len, hidden), jnp.float32)
    weight, bias = init_gaze_prediction_params(k_p, hidden, seq_len, num_classes)

    out = gaze_prediction_forward(x, weight, bias)
    out = jax.block_until_ready(out)
    assert out.shape == (bs, num_classes)

    # Reference with the same bf16 operand rounding, f32 accumulation.
    x_bf = x.reshape(bs, -1).astype(jnp.bfloat16).astype(jnp.float32)
    w_bf = weight.astype(jnp.bfloat16).astype(jnp.float32)
    ref_bf16 = x_bf @ w_bf.T + bias
    assert jnp.allclose(out, ref_bf16, atol=1e-3, rtol=1e-3)

    # Loose sanity check against the pure-f32 math of the PyTorch module.
    ref_f32 = x.reshape(bs, -1) @ weight.T + bias
    assert jnp.allclose(out, ref_f32, atol=5e-2, rtol=5e-2)

    print("KERNEL_OK")
</pallas_src>

<mosaic_0001>
module attributes {stable_mosaic.version = 11 : i64} {
  func.func @_fc_kernel(%arg0: i32, %arg1: memref<8x256xbf16, #tpu.memory_space<vmem>>, %arg2: memref<128x256xbf16, #tpu.memory_space<vmem>>, %arg3: memref<1x128xf32, #tpu.memory_space<vmem>>, %arg4: memref<8x128xf32, #tpu.memory_space<vmem>>, %arg5: memref<8x128xf32, #tpu.memory_space<vmem>>) attributes {dimension_semantics = [#tpu.dimension_semantics<arbitrary>], iteration_bounds = array<i64: 1>, scalar_prefetch = 0 : i64, scratch_operands = 1 : i64, tpu.core_type = #tpu.core_type<tc>, window_params = [{transform_indices = @transform_0, window_bounds = array<i64: 8, 256>}, {transform_indices = @transform_1, window_bounds = array<i64: 128, 256>}, {pipeline_mode = #tpu.pipeline_mode<synchronous>, transform_indices = @transform_2, window_bounds = array<i64: 1, 128>}, {pipeline_mode = #tpu.pipeline_mode<synchronous>, transform_indices = @transform_3, window_bounds = array<i64: 8, 128>}]} {
    %c0_i32 = arith.constant 0 : i32
    %0 = arith.cmpi eq, %arg0, %c0_i32 : i32
    %1 = arith.extui %0 : i1 to i32
    %c0_i32_0 = arith.constant 0 : i32
    %2 = arith.cmpi ne, %1, %c0_i32_0 : i32
    scf.if %2 {
      %cst_10 = arith.constant 0.000000e+00 : f32
      %12 = vector.broadcast %cst_10 : f32 to vector<8x128xf32>
      %c0_11 = arith.constant 0 : index
      %c0_12 = arith.constant 0 : index
      %13 = vector.load %arg5[%c0_11, %c0_12] : memref<8x128xf32, #tpu.memory_space<vmem>>, vector<8x128xf32>
      tpu.vector_store %arg5[%c0_11, %c0_12], %12 {strides = array<i32>} : memref<8x128xf32, #tpu.memory_space<vmem>>, vector<8x128xf32>,
    } else {
    }
    %c0 = arith.constant 0 : index
    %c0_1 = arith.constant 0 : index
    %3 = vector.load %arg5[%c0, %c0_1] : memref<8x128xf32, #tpu.memory_space<vmem>>, vector<8x128xf32>
    %c0_2 = arith.constant 0 : index
    %c0_3 = arith.constant 0 : index
    %4 = vector.load %arg1[%c0_2, %c0_3] : memref<8x256xbf16, #tpu.memory_space<vmem>>, vector<8x256xbf16>
    %c0_4 = arith.constant 0 : index
    %c0_5 = arith.constant 0 : index
    %5 = vector.load %arg2[%c0_4, %c0_5] : memref<128x256xbf16, #tpu.memory_space<vmem>>, vector<128x256xbf16>
    %cst = arith.constant dense<0.000000e+00> : vector<8x128xf32>
    %6 = tpu.matmul %4, %5, %cst {dimension_numbers = #tpu.dot_dimension_numbers<[1], [1], [0], [0], [0, 0, 1, 0], [], []>} : vector<8x256xbf16>, vector<128x256xbf16>, vector<8x128xf32> -> vector<8x128xf32>
    %7 = arith.addf %3, %6 : vector<8x128xf32>
    %c0_6 = arith.constant 0 : index
    %c0_7 = arith.constant 0 : index
    %8 = vector.load %arg5[%c0_6, %c0_7] : memref<8x128xf32, #tpu.memory_space<vmem>>, vector<8x128xf32>
    tpu.vector_store %arg5[%c0_6, %c0_7], %7 {strides = array<i32>} : memref<8x128xf32, #tpu.memory_space<vmem>>, vector<8x128xf32>,
    %c0_i32_8 = arith.constant 0 : i32
    %9 = arith.cmpi eq, %arg0, %c0_i32_8 : i32
    %10 = arith.extui %9 : i1 to i32
    %c0_i32_9 = arith.constant 0 : i32
    %11 = arith.cmpi ne, %10, %c0_i32_9 : i32
    scf.if %11 {
      %c0_10 = arith.constant 0 : index
      %c0_11 = arith.constant 0 : index
      %12 = vector.load %arg5[%c0_10, %c0_11] : memref<8x128xf32, #tpu.memory_space<vmem>>, vector<8x128xf32>
      %c0_12 = arith.constant 0 : index
      %c0_13 = arith.constant 0 : index
      %13 = vector.load %arg3[%c0_12, %c0_13] : memref<1x128xf32, #tpu.memory_space<vmem>>, vector<1x128xf32>
      %14 = vector.broadcast %13 : vector<1x128xf32> to vector<8x128xf32>
      %15 = arith.addf %12, %14 : vector<8x128xf32>
      %c0_14 = arith.constant 0 : index
      %c0_15 = arith.constant 0 : index
      %16 = vector.load %arg4[%c0_14, %c0_15] : memref<8x128xf32, #tpu.memory_space<vmem>>, vector<8x128xf32>
      tpu.vector_store %arg4[%c0_14, %c0_15], %15 {strides = array<i32>} : memref<8x128xf32, #tpu.memory_space<vmem>>, vector<8x128xf32>,
    } else {
    }
    return
  }
  func.func @transform_0(%arg0: i32) -> (i32, i32) {
    %c0_i32 = arith.constant 0 : i32
    %c0_i32_0 = arith.constant 0 : i32
    return %c0_i32, %arg0 : i32, i32
  }
  func.func @transform_1(%arg0: i32) -> (i32, i32) {
    %c0_i32 = arith.constant 0 : i32
    %c0_i32_0 = arith.constant 0 : i32
    return %c0_i32, %arg0 : i32, i32
  }
  func.func @transform_2(%arg0: i32) -> (i32, i32) {
    %c0_i32 = arith.constant 0 : i32
    %c0_i32_0 = arith.constant 0 : i32
    %c0_i32_1 = arith.constant 0 : i32
    return %c0_i32, %c0_i32_0 : i32, i32
  }
  func.func @transform_3(%arg0: i32) -> (i32, i32) {
    %c0_i32 = arith.constant 0 : i32
    %c0_i32_0 = arith.constant 0 : i32
    %c0_i32_1 = arith.constant 0 : i32
    return %c0_i32, %c0_i32_0 : i32, i32
  }
}

</mosaic_0001>

<llo_original>
// kernel: tpu_custom_call.1
$region0: #{tpu_custom_call.1}
  #allocation0 [shape = 'u32[]', space=smem, size = 0x4, offset = 0x4, fixed_abs, tag = 'smem constant byte address 0x4 - core index']
  #allocation1 [shape = 'u32[144,128]{1,0:T(1,128)}', space=vmem, size = 0x12000, scoped, tag = 'internal scratch']
  #allocation2 [shape = 'f32[8,128]{1,0:T(8,128)}', space=vmem, size = 0x1000, scoped, tag = 'scratch operand']
  %s0 = inlined_call_operand.hbm [shape: bf16[8,256], index: 0, kind: input, shape index: {}]
  %s1 = inlined_call_operand.hbm [shape: bf16[128,256], index: 1, kind: input, shape index: {}]
  %s2 = inlined_call_operand.vmem [shape: f32[1,128], index: 2, kind: input, shape index: {}]
  %s3 = inlined_call_operand.hbm [shape: f32[8,128], index: 3, kind: output, shape index: {}]
  %s4 = sld [smem:[#allocation0]]
  $region38: #{tpu_custom_call.1} parent=0
    _
  %s6 = ssub.s32 1, %s4
  %s7 = scalar_select 0, %s6, %s4
  $region1: #{tpu_custom_call.1} parent=0
    #allocation3 [shape = 'u8[4096]{0}', space=vmem, size = 0x1000, scoped, tag = 'input window, operand 0, single buffered']
    #allocation4 [shape = 's32[1]{0}', space=sflag, size = 0x4, scoped, tag = 'scoped memory for tpu_custom_call.1']
    #allocation5 [shape = 's32[1]{0}', space=sflag, size = 0x4, scoped, tag = 'scoped memory for tpu_custom_call.1']
    #allocation6 [shape = 'u8[65536]{0}', space=vmem, size = 0x10000, scoped, tag = 'input window, operand 1, single buffered']
    #allocation7 [shape = 's32[1]{0}', space=sflag, size = 0x4, scoped, tag = 'scoped memory for tpu_custom_call.1']
    #allocation8 [shape = 'u8[4096]{0}', space=vmem, size = 0x1000, scoped, tag = 'output window, operand 0, single buffered']
    %8 = vsyncpa [#allocation4], 0
    %9 = vsyncpa [#allocation7], 0
    %10 = vsyncpa [#allocation5], 0
    // Predicated region
    $region2: #{tpu_custom_call.1} parent=1 // pred_check
      _
    $region3: #{tpu_custom_call.1} parent=1 // pred_check_branch
      %12 = sbr.rel (0) target = $region5
    $region4: #{tpu_custom_call.1} parent=1 // pred_region
      %s14 = ssub.s32 128, 128
      %15 = vsyncadd [#allocation4], %s14
      %s17 = sshll.u32 [#allocation3], 4
      %s18 = int_to_ptr.vmem [resolvable:$true] %s17
      %20 = dma.hbm_to_vmem [thread:$0]  %s0, 128, %s18, [#allocation4]
    $region5: #{tpu_custom_call.1} parent=1 // pred_fallthru
      _
    // Predicated region
    $region6: #{tpu_custom_call.1} parent=1 // pred_check
      _
    $region7: #{tpu_custom_call.1} parent=1 // pred_check_branch
      %22 = sbr.rel (0) target = $region9
    $region8: #{tpu_custom_call.1} parent=1 // pred_region
      %s24 = ssub.s32 2048, 2048
      %25 = vsyncadd [#allocation7], %s24
      %s26 = sshll.u32 [#allocation6], 4
      %s27 = int_to_ptr.vmem [resolvable:$true] %s26
      %32 = dma.hbm_to_vmem [thread:$0]  %s1, 2048, %s27, [#allocation7], 128, 128, 8
    $region9: #{tpu_custom_call.1} parent=1 // pred_fallthru
      _
    // Predicated region
    $region10: #{tpu_custom_call.1} parent=1 // pred_check
      _
    $region11: #{tpu_custom_call.1} parent=1 // pred_check_branch
      %34 = sbr.rel (0) target = $region13
    $region12: #{tpu_custom_call.1} parent=1 // pred_region
      _
    $region13: #{tpu_custom_call.1} parent=1 // pred_fallthru
      _
    // Predicated region
    $region14: #{tpu_custom_call.1} parent=1 // pred_check
      _
    $region15: #{tpu_custom_call.1} parent=1 // pred_check_branch
      %36 = sbr.rel (0) target = $region17
    $region16: #{tpu_custom_call.1} parent=1 // pred_region
      %37 = dma.done [#allocation4], 128
    $region17: #{tpu_custom_call.1} parent=1 // pred_fallthru
      _
    // Predicated region
    $region18: #{tpu_custom_call.1} parent=1 // pred_check
      _
    $region19: #{tpu_custom_call.1} parent=1 // pred_check_branch
      %39 = sbr.rel (0) target = $region21
    $region20: #{tpu_custom_call.1} parent=1 // pred_region
      %40 = dma.done [#allocation7], 2048
    $region21: #{tpu_custom_call.1} parent=1 // pred_fallthru
      _
    %p42 = scmp.eq.s32.totalorder 0, 0
    // Predicated region
    $region22: #{tpu_custom_call.1} parent=1 // pred_check
      %p43 = pneg %p42
    $region23: #{tpu_custom_call.1} parent=1 // pred_check_branch
      %45 = sbr.rel (%p43) target = $region25
    $region24: #{tpu_custom_call.1} parent=1 // pred_region
      %46 = vst [vmem:[#allocation2] sm:$0xff] 0.0
    $region25: #{tpu_custom_call.1} parent=1 // pred_fallthru
      _
    %v47 = vld [vmem:[#allocation2] sm:$0xff]
    %v48 = vld [vmem:[#allocation3] sm:$0xff]
    %v49 = vld [vmem:[#allocation6] sm:$0xff]
    %v50 = vld [vmem:[#allocation6 + $0x8] sm:$0xff]
    %v51 = vld [vmem:[#allocation6 + $0x10] sm:$0xff]
    %v52 = vld [vmem:[#allocation6 + $0x18] sm:$0xff]
    %v53 = vld [vmem:[#allocation6 + $0x20] sm:$0xff]
    %v54 = vld [vmem:[#allocation6 + $0x28] sm:$0xff]
    %v55 = vld [vmem:[#allocation6 + $0x30] sm:$0xff]
    %v56 = vld [vmem:[#allocation6 + $0x38] sm:$0xff]
    %v57 = vld [vmem:[#allocation6 + $0x40] sm:$0xff]
    %v58 = vld [vmem:[#allocation6 + $0x48] sm:$0xff]
    %v59 = vld [vmem:[#allocation6 + $0x50] sm:$0xff]
    %v60 = vld [vmem:[#allocation6 + $0x58] sm:$0xff]
    %v61 = vld [vmem:[#allocation6 + $0x60] sm:$0xff]
    %v62 = vld [vmem:[#allocation6 + $0x68] sm:$0xff]
    %v63 = vld [vmem:[#allocation6 + $0x70] sm:$0xff]
    %v64 = vld [vmem:[#allocation6 + $0x78] sm:$0xff]
    %v66 = vunpack.c.l.b16 %v48
    %v67 = vunpack.c.h.b16 %v48
    %v68 = vpack.c.b16 %v66, %v66
    %v69 = vpack.c.b16 %v67, %v67
    %v88 = vunpack.c.l.b16 %v49
    %v89 = vunpack.c.h.b16 %v49
    %v90 = vunpack.c.l.b16 %v50
    %v91 = vunpack.c.h.b16 %v50
    %v92 = vunpack.c.l.b16 %v51
    %v93 = vunpack.c.h.b16 %v51
    %v94 = vunpack.c.l.b16 %v52
    %v95 = vunpack.c.h.b16 %v52
    %v96 = vunpack.c.l.b16 %v53
    %v97 = vunpack.c.h.b16 %v53
    %v98 = vunpack.c.l.b16 %v54
    %v99 = vunpack.c.h.b16 %v54
    %v100 = vunpack.c.l.b16 %v55
    %v101 = vunpack.c.h.b16 %v55
    %v102 = vunpack.c.l.b16 %v56
    %v103 = vunpack.c.h.b16 %v56
    %v104 = vunpack.c.l.b16 %v57
    %v105 = vunpack.c.h.b16 %v57
    %v106 = vunpack.c.l.b16 %v58
    %v107 = vunpack.c.h.b16 %v58
    %v108 = vunpack.c.l.b16 %v59
    %v109 = vunpack.c.h.b16 %v59
    %v110 = vunpack.c.l.b16 %v60
    %v111 = vunpack.c.h.b16 %v60
    %v112 = vunpack.c.l.b16 %v61
    %v113 = vunpack.c.h.b16 %v61
    %v114 = vunpack.c.l.b16 %v62
    %v115 = vunpack.c.h.b16 %v62
    %v116 = vunpack.c.l.b16 %v63
    %v117 = vunpack.c.h.b16 %v63
    %v118 = vunpack.c.l.b16 %v64
    %v119 = vunpack.c.h.b16 %v64
    %v120 = vpack.c.b16 %v90, %v88
    %v121 = vpack.c.b16 %v91, %v89
    %v122 = vpack.c.b16 %v94, %v92
    %v123 = vpack.c.b16 %v95, %v93
    %v124 = vpack.c.b16 %v98, %v96
    %v125 = vpack.c.b16 %v99, %v97
    %v126 = vpack.c.b16 %v102, %v100
    %v127 = vpack.c.b16 %v103, %v101
    %v128 = vpack.c.b16 %v106, %v104
    %v129 = vpack.c.b16 %v107, %v105
    %v130 = vpack.c.b16 %v110, %v108
    %v131 = vpack.c.b16 %v111, %v109
    %v132 = vpack.c.b16 %v114, %v112
    %v133 = vpack.c.b16 %v115, %v113
    %v134 = vpack.c.b16 %v118, %v116
    %v135 = vpack.c.b16 %v119, %v117
    %152 = vmatprep.subr.bf16.mxu0 %v121
    %153 = vmatpush1.bf16.xpose.msra.mxu0 %v120
    %154 = vmatprep.subr.bf16.mxu0 %v123
    %155 = vmatpush1.bf16.xpose.msra.mxu0 %v122
    %156 = vmatprep.subr.bf16.mxu0 %v125
    %157 = vmatpush1.bf16.xpose.msra.mxu0 %v124
    %158 = vmatprep.subr.bf16.mxu0 %v127
    %159 = vmatpush1.bf16.xpose.msra.mxu0 %v126
    %160 = vmatprep.subr.bf16.mxu0 %v129
    %161 = vmatpush1.bf16.xpose.msra.mxu0 %v128
    %162 = vmatprep.subr.bf16.mxu0 %v131
    %163 = vmatpush1.bf16.xpose.msra.mxu0 %v130
    %164 = vmatprep.subr.bf16.mxu0 %v133
    %165 = vmatpush1.bf16.xpose.msra.mxu0 %v132
    %166 = vmatprep.subr.bf16.mxu0 %v135
    %167 = vmatpush1.bf16.xpose.msra.mxu0 %v134
    %168 = vmatprep.subr.bf16.mxu0 0
    %169 = vmatpush1.bf16.xpose.msra.mxu0 0
    %170 = vmatprep.subr.bf16.mxu0 0
    %171 = vmatpush1.bf16.xpose.msra.mxu0 0
    %172 = vmatprep.subr.bf16.mxu0 0
    %173 = vmatpush1.bf16.xpose.msra.mxu0 0
    %174 = vmatprep.subr.bf16.mxu0 0
    %175 = vmatpush1.bf16.xpose.msra.mxu0 0
    %176 = vmatprep.subr.bf16.mxu0 0
    %177 = vmatpush1.bf16.xpose.msra.mxu0 0
    %178 = vmatprep.subr.bf16.mxu0 0
    %179 = vmatpush1.bf16.xpose.msra.mxu0 0
    %180 = vmatprep.subr.bf16.mxu0 0
    %181 = vmatpush1.bf16.xpose.msra.mxu0 0
    %182 = vmatprep.subr.bf16.mxu0 0
    %183 = vmatpush1.bf16.xpose.msra.mxu0 0
    %184 = vmatprep.mubr.bf16.mxu0 %v69
    %185 = vmatmul.mubr.bf16.gmra.mrb[0].mxu0 %v68
    %v186 = vpop.f32.mrb[0].mxu0
    %v187 = vadd.f32 0.0, %v186
    %v188 = vpop.f32.mrb[0].mxu0
    %v189 = vpop.f32.mrb[0].mxu0
    %v190 = vpop.f32.mrb[0].mxu0
    %191 = vdwg.mxu0
    %v192 = vadd.f32 %v47, %v187
    %193 = vst [vmem:[#allocation2] sm:$0xff] %v192
    // Predicated region
    $region26: #{tpu_custom_call.1} parent=1 // pred_check
      %p194 = pneg %p42
    $region27: #{tpu_custom_call.1} parent=1 // pred_check_branch
      %196 = sbr.rel (%p194) target = $region29
    $region28: #{tpu_custom_call.1} parent=1 // pred_region
      %v197 = vld [vmem:[#allocation2] sm:$0xff]
      %v198 = vld [vmem:[%s2] sm:$0x1]
      %v200 = vlaneseq
      %v201 = vshrl.u32 %v200, 7
      %v202 = vsub.s32 0, %v201
      %v203 = vrot.slane %v198, %v202
      %v205 = vadd.f32 %v197, %v203
      %206 = vst [vmem:[#allocation8] sm:$0xff] %v205
    $region29: #{tpu_custom_call.1} parent=1 // pred_fallthru
      _
    // Predicated region
    $region30: #{tpu_custom_call.1} parent=1 // pred_check
      _
    $region31: #{tpu_custom_call.1} parent=1 // pred_check_branch
      %208 = sbr.rel (0) target = $region33
    $region32: #{tpu_custom_call.1} parent=1 // pred_region
      %s210 = ssub.s32 128, 128
      %211 = vsyncadd [#allocation5], %s210
      %s213 = sshll.u32 [#allocation8], 4
      %s214 = int_to_ptr.vmem [resolvable:$true] %s213
      %216 = dma.vmem_to_hbm [thread:$0]  %s214, 128, %s3, [#allocation5]
    $region33: #{tpu_custom_call.1} parent=1 // pred_fallthru
      _
    // Predicated region
    $region34: #{tpu_custom_call.1} parent=1 // pred_check
      _
    $region35: #{tpu_custom_call.1} parent=1 // pred_check_branch
      %218 = sbr.rel (0) target = $region37
    $region36: #{tpu_custom_call.1} parent=1 // pred_region
      %219 = dma.done [#allocation5], 128
    $region37: #{tpu_custom_call.1} parent=1 // pred_fallthru
      _
    %220 = vsyncpa [#allocation4], 1
    %221 = vsyncpa [#allocation7], 1
    %222 = vsyncpa [#allocation5], 1

</llo_original>
